<compile_context>
chip_gen: v5e
topology: v5e:2x2
jax: 0.10.0
libtpu: 0.0.40
codegen_flags: <defaults>
</compile_context>

<pallas_src>
import numpy as np
import jax
import jax.numpy as jnp
from jax import lax
from jax.experimental import pallas as pl
from jax.experimental.pallas import tpu as pltpu


# ---------------------------------------------------------------------------
# Host-side parameter setup (mirrors LeniaStepFFT.compute_kernel, kn = 0)
# ---------------------------------------------------------------------------
def _compute_kernel_norm(SX, SY, b):
    x = np.arange(SX)
    y = np.arange(SY)
    xx = np.tile(x, (SY, 1))                                    # (SY, SX)
    yy = np.tile(y.reshape(-1, 1), (1, SX))                     # (SY, SX)
    X = (xx - SX // 2).astype(np.float64) / float(SX / 2)
    Y = (yy - SY // 2).astype(np.float64) / float(SY / 2)
    D = np.sqrt(X ** 2 + Y ** 2)
    k = len(b)
    kr = k * D
    bsel = b[np.minimum(np.floor(kr).astype(np.int64), k - 1)]
    kfunc = lambda r: (4.0 * r * (1.0 - r)) ** 4                # kernel_core[0]
    kernel = (D < 1).astype(np.float64) * kfunc(np.minimum(kr % 1.0, 1.0)) * bsel
    return kernel / kernel.sum()                                # (SY, SX)


def _build_conv_matrix(kernel_norm):
    """W[p, r] s.t. fftshift(ifft2(fft2(kernel)*fft2(x)))_flat[p] = sum_r W[p,r] x_flat[r]."""
    SY, SX = kernel_norm.shape
    py = np.arange(SY); ry = np.arange(SY)
    px = np.arange(SX); rx = np.arange(SX)
    iy = (py[:, None] + SY // 2 - ry[None, :]) % SY             # (SY, SY)
    ix = (px[:, None] + SX // 2 - rx[None, :]) % SX             # (SX, SX)
    W4 = kernel_norm[iy[:, None, :, None], ix[None, :, None, :]]  # [py, px, ry, rx]
    return W4.reshape(SY * SX, SY * SX)


def _round_up(v, m):
    return ((v + m - 1) // m) * m


def _cdiv(a, b):
    return -(-a // b)


_MAX_TILE_M = 256   # MXU-width tile for the row axis on v6e/v7x (2 passes on v5e)


def _vmem_capacity_bytes():
    """Per-core VMEM capacity; conservative fallback if the query fails."""
    try:
        cap = int(pltpu.get_tpu_info().vmem_capacity_bytes)
        if cap > 0:
            return cap
    except Exception:
        pass
    return 64 * 1024 * 1024   # v7x per-TensorCore VMEM (smallest generation)


def _choose_row_tiling(M):
    """Pad rows only to a multiple of 8 and balance tiles; keep grid >= 2
    whenever possible so v7x's second TensorCore gets work."""
    Mp8 = _round_up(max(M, 1), 8)
    n_tiles = max(1, _cdiv(Mp8, _MAX_TILE_M))
    if Mp8 > 8:
        n_tiles = max(n_tiles, 2)
    tile_m = _round_up(_cdiv(Mp8, n_tiles), 8)
    n_tiles = _cdiv(Mp8, tile_m)
    Mp = tile_m * n_tiles
    return Mp, tile_m, n_tiles


def _vmem_budget_bytes(N, tile_m):
    wt = N * N * 2                                  # W^T bf16, single-buffered
    x_in = 2 * tile_m * N * 4                       # state tile, double-buffered
    out = 2 * tile_m * N * 4                        # output tile, double-buffered
    temps = tile_m * N * (4 + 4 + 2 + 8)            # loop carry, pot, bf16 cast, ew temps
    return wt + x_in + out + temps


# ---------------------------------------------------------------------------
# Pallas kernel: n_steps of (circulant matmul -> growth field -> clamp), fused
# ---------------------------------------------------------------------------
def _make_rollout_kernel(m, neg_inv_two_s2, log_two_over_T, neg_inv_T):
    """Constants precomputed on the host (no in-kernel divides).

    Algebraically identical to the torch forward (gn=1):
        field / T = (2/T) * exp(-(pot-m)^2/(2 s^2)) - 1/T
                  = exp(-(pot-m)^2/(2 s^2) + ln(2/T)) - 1/T
    which removes two full-tile VPU ops per step (v6e has no f32 FMA)."""
    def kernel(n_steps_ref, x_ref, wt_ref, o_ref):
        def step(_, x):                                   # x: (tile_m, N) f32
            # bf16 operands -> single-pass native MXU; accumulate in f32.
            pot = jnp.dot(x.astype(jnp.bfloat16), wt_ref[...],
                          preferred_element_type=jnp.float32)
            d = pot - m
            g = jnp.exp(d * d * neg_inv_two_s2 + log_two_over_T)   # EUP
            return jnp.clip(x + g + neg_inv_T, 0.0, 1.0)
        # Whole rollout in-kernel: W^T and the state stay in VMEM between
        # steps.  n_steps is a runtime SMEM scalar, so one compile serves all
        # rollout lengths; steps are serially dependent so no unroll needed.
        o_ref[...] = lax.fori_loop(0, n_steps_ref[0], step, x_ref[...])
    return kernel


class LeniaStepFFTPallas:
    def __init__(self, R, T, b, m, s, kn=0, gn=1, is_soft_clip=False, SX=16, SY=16):
        # module hardcodes kn=0, gn=1
        # TODO(synk): soft_clip branch (is_soft_clip=True) not implemented.
        assert not is_soft_clip
        self.SX, self.SY = SX, SY
        self.T = float(T)
        self.m = float(m)
        self.s = float(s)
        self.neg_inv_T = -1.0 / self.T
        self.log_two_over_T = float(np.log(2.0 / self.T))
        self.neg_inv_two_s2 = -1.0 / (2.0 * self.s * self.s)

        self.kernel_norm = _compute_kernel_norm(SX, SY, np.asarray(b, np.float64))
        W = _build_conv_matrix(self.kernel_norm)                # pot = x_flat @ W^T

        # O(N^2) circulant weights kept as ONE single-buffered VMEM block
        # (~128 KiB bf16 at 16x16); guard against boards whose weights +
        # worst-case row tiles no longer fit the smallest generation's VMEM.
        N = SY * SX
        self.vmem_cap = _vmem_capacity_bytes()
        if _vmem_budget_bytes(N, _MAX_TILE_M) > (self.vmem_cap * 8) // 10:
            # TODO(synk): K-tiled, double-buffered streamed-weight matmul for large boards.
            raise NotImplementedError("board too large for a fully resident circulant weight block")

        self.WT = jnp.asarray(W.T, jnp.bfloat16)                # (N, N), bf16 weights
        self._cache = {}

    # -- build one fused pallas_call for a given input shape (any n_steps) --
    def _build(self, x_shape):
        B, C, SY, SX = x_shape
        assert (SY, SX) == (self.SY, self.SX)
        N = SY * SX
        M = B * C
        Mp, tile_m, n_tiles = _choose_row_tiling(M)

        budget = _vmem_budget_bytes(N, tile_m)
        if budget > (self.vmem_cap * 9) // 10:
            # TODO(synk): K-tiled, double-buffered streamed-weight matmul for large boards.
            raise NotImplementedError("VMEM budget exceeded for this board/batch size")
        vmem_limit = int(min((self.vmem_cap * 9) // 10,
                             max(budget + budget // 2 + (4 << 20), 16 << 20)))

        kernel = _make_rollout_kernel(self.m, self.neg_inv_two_s2,
                                      self.log_two_over_T, self.neg_inv_T)
        call = pl.pallas_call(
            kernel,
            out_shape=jax.ShapeDtypeStruct((Mp, N), jnp.float32),
            grid_spec=pltpu.PrefetchScalarGridSpec(
                # n_steps lands in SMEM before the grid runs (dynamic loop bound).
                num_scalar_prefetch=1,
                grid=(n_tiles,),
                in_specs=[
                    # state tile: rows of (B*C, SY*SX), lane-dense last dim
                    pl.BlockSpec((tile_m, N), lambda i, n_ref: (i, 0)),
                    # W^T: constant block index -> fetched once; single-buffered
                    # so it doesn't burn a second N*N*2-byte VMEM buffer.
                    pl.BlockSpec((N, N), lambda i, n_ref: (0, 0),
                                 pipeline_mode=pl.Buffered(buffer_count=1)),
                ],
                out_specs=pl.BlockSpec((tile_m, N), lambda i, n_ref: (i, 0)),
            ),
            compiler_params=pltpu.CompilerParams(
                # row tiles are independent -> shard across v7x's two TensorCores
                dimension_semantics=("parallel",),
                vmem_limit_bytes=vmem_limit,
            ),
            # advisory; per-step cost (n_steps is dynamic)
            cost_estimate=pl.CostEstimate(
                flops=2 * Mp * N * N,
                transcendentals=Mp * N,
                bytes_accessed=2 * Mp * N * 4 + N * N * 2,
            ),
        )
        wt = self.WT

        def run(x, n_steps_arr):
            xf = x.reshape(M, N).astype(jnp.float32)
            if Mp != M:
                xf = jnp.pad(xf, ((0, Mp - M), (0, 0)))   # pad rows independent; sliced off
            out = call(n_steps_arr, xf, wt)
            return out[:M].reshape(B, C, SY, SX)

        return jax.jit(run)

    def __call__(self, x, n_steps=1):                           # x: (B, C, SY, SX)
        key = tuple(int(d) for d in x.shape)
        if key not in self._cache:
            self._cache[key] = self._build(x.shape)
        return self._cache[key](x, jnp.asarray([int(n_steps)], jnp.int32))


# ---------------------------------------------------------------------------
# Pure-JAX FFT reference (mirrors the torch forward) for a correctness check
# ---------------------------------------------------------------------------
def _reference_fft(x, kernel_norm, m, s, T, n_steps=1):
    SY, SX = kernel_norm.shape
    kfft = jnp.fft.fft2(jnp.asarray(kernel_norm, jnp.float32))

    def step(x):
        xfft = jnp.fft.fft2(x.astype(jnp.complex64), axes=(-2, -1))
        pot = jnp.real(jnp.fft.ifft2(kfft[None, None] * xfft, axes=(-2, -1)))
        pot = jnp.roll(pot, shift=(-(SY // 2), -(SX // 2)), axis=(2, 3))   # roll_n twice
        field = jnp.exp(-(pot - m) ** 2 / (2.0 * s * s)) * 2.0 - 1.0
        return jnp.clip(x + (1.0 / T) * field, 0.0, 1.0)

    for _ in range(n_steps):
        x = step(x)
    return x


if __name__ == "__main__":
    B, C, SY, SX = 2, 4, 16, 16
    R, T = 13.0, 10.0
    b = [1.0, 0.5]
    m, s = 0.3, 0.1

    key = jax.random.PRNGKey(0)
    x = jax.random.uniform(key, (B, C, SY, SX), dtype=jnp.float32)

    step = LeniaStepFFTPallas(R, T, b, m, s, kn=0, gn=1, is_soft_clip=False, SX=SX, SY=SY)

    # 1) single step: matches the torch module forward (bf16 matmul, f32 elementwise)
    out1 = step(x, n_steps=1)
    jax.block_until_ready(out1)
    ref1 = _reference_fft(x, step.kernel_norm, m, s, T, n_steps=1)
    np.testing.assert_allclose(np.asarray(out1), np.asarray(ref1), atol=2e-3, rtol=0)

    # 2) fused 4-step rollout: same compiled kernel (n_steps is a runtime scalar),
    #    W^T + state stay in VMEM for the whole rollout.
    out4 = step(x, n_steps=4)
    jax.block_until_ready(out4)
    ref4 = _reference_fft(x, step.kernel_norm, m, s, T, n_steps=4)
    np.testing.assert_allclose(np.asarray(out4), np.asarray(ref4), atol=1e-2, rtol=0)

    print("KERNEL_OK")
</pallas_src>

<mosaic_0001>
module attributes {stable_mosaic.version = 11 : i64} {
  func.func @kernel(%arg0: i32, %arg1: memref<1xi32, #tpu.memory_space<smem>>, %arg2: memref<8x256xf32, #tpu.memory_space<vmem>>, %arg3: memref<256x256xbf16, #tpu.memory_space<vmem>>, %arg4: memref<8x256xf32, #tpu.memory_space<vmem>>) attributes {dimension_semantics = [#tpu.dimension_semantics<parallel>], iteration_bounds = array<i64: 1>, scalar_prefetch = 1 : i64, scratch_operands = 0 : i64, tpu.core_type = #tpu.core_type<tc>, window_params = [{transform_indices = @transform_0, window_bounds = array<i64: 8, 256>}, {pipeline_mode = #tpu.pipeline_mode<synchronous>, transform_indices = @transform_1, window_bounds = array<i64: 256, 256>}, {transform_indices = @transform_2, window_bounds = array<i64: 8, 256>}]} {
    %c0 = arith.constant 0 : index
    %0 = memref.load %arg1[%c0] : memref<1xi32, #tpu.memory_space<smem>>
    %c0_0 = arith.constant 0 : index
    %c0_1 = arith.constant 0 : index
    %1 = vector.load %arg2[%c0_0, %c0_1] : memref<8x256xf32, #tpu.memory_space<vmem>>, vector<8x256xf32>
    %c0_i32 = arith.constant 0 : i32
    %2 = arith.subi %0, %c0_i32 : i32
    %3 = arith.addi %c0_i32, %2 : i32
    %c1_i32 = arith.constant 1 : i32
    %4 = scf.for %arg5 = %c0_i32 to %3 step %c1_i32 iter_args(%arg6 = %1) -> (vector<8x256xf32>)  : i32 {
      %6 = arith.truncf %arg6 : vector<8x256xf32> to vector<8x256xbf16>
      %c0_4 = arith.constant 0 : index
      %c0_5 = arith.constant 0 : index
      %7 = vector.load %arg3[%c0_4, %c0_5] : memref<256x256xbf16, #tpu.memory_space<vmem>>, vector<256x256xbf16>
      %cst = arith.constant dense<0.000000e+00> : vector<8x256xf32>
      %8 = tpu.matmul %6, %7, %cst {dimension_numbers = #tpu.dot_dimension_numbers<[1], [0], [0], [1], [0, 0, 1, 1], [], []>} : vector<8x256xbf16>, vector<256x256xbf16>, vector<8x256xf32> -> vector<8x256xf32>
      %cst_6 = arith.constant 3.000000e-01 : f32
      %9 = vector.broadcast %cst_6 : f32 to vector<8x256xf32>
      %10 = arith.subf %8, %9 : vector<8x256xf32>
      %11 = arith.mulf %10, %10 : vector<8x256xf32>
      %cst_7 = arith.constant -5.000000e+01 : f32
      %12 = vector.broadcast %cst_7 : f32 to vector<8x256xf32>
      %13 = arith.mulf %11, %12 : vector<8x256xf32>
      %cst_8 = arith.constant -1.60943794 : f32
      %14 = vector.broadcast %cst_8 : f32 to vector<8x256xf32>
      %15 = arith.addf %13, %14 : vector<8x256xf32>
      %16 = math.exp %15 : vector<8x256xf32>
      %17 = arith.addf %arg6, %16 : vector<8x256xf32>
      %cst_9 = arith.constant -1.000000e-01 : f32
      %18 = vector.broadcast %cst_9 : f32 to vector<8x256xf32>
      %19 = arith.addf %17, %18 : vector<8x256xf32>
      %cst_10 = arith.constant 0.000000e+00 : f32
      %cst_11 = arith.constant 1.000000e+00 : f32
      %20 = vector.broadcast %cst_10 : f32 to vector<8x256xf32>
      %21 = arith.maximumf %20, %19 : vector<8x256xf32>
      %22 = vector.broadcast %cst_11 : f32 to vector<8x256xf32>
      %23 = arith.minimumf %22, %21 : vector<8x256xf32>
      scf.yield %23 : vector<8x256xf32>
    }
    %c0_2 = arith.constant 0 : index
    %c0_3 = arith.constant 0 : index
    %5 = vector.load %arg4[%c0_2, %c0_3] : memref<8x256xf32, #tpu.memory_space<vmem>>, vector<8x256xf32>
    tpu.vector_store %arg4[%c0_2, %c0_3], %4 {strides = array<i32>} : memref<8x256xf32, #tpu.memory_space<vmem>>, vector<8x256xf32>,
    return
  }
  func.func @transform_0(%arg0: i32, %arg1: memref<1xi32, #tpu.memory_space<smem>>) -> (i32, i32) {
    %c0_i32 = arith.constant 0 : i32
    %c0_i32_0 = arith.constant 0 : i32
    return %arg0, %c0_i32 : i32, i32
  }
  func.func @transform_1(%arg0: i32, %arg1: memref<1xi32, #tpu.memory_space<smem>>) -> (i32, i32) {
    %c0_i32 = arith.constant 0 : i32
    %c0_i32_0 = arith.constant 0 : i32
    %c0_i32_1 = arith.constant 0 : i32
    return %c0_i32, %c0_i32_0 : i32, i32
  }
  func.func @transform_2(%arg0: i32, %arg1: memref<1xi32, #tpu.memory_space<smem>>) -> (i32, i32) {
    %c0_i32 = arith.constant 0 : i32
    %c0_i32_0 = arith.constant 0 : i32
    return %arg0, %c0_i32 : i32, i32
  }
}

</mosaic_0001>

<llo_original>
// kernel: run.1
$region0: #{run.1}
  #allocation0 [shape = 'u32[]', space=smem, size = 0x4, offset = 0x4, fixed_abs, tag = 'smem constant byte address 0x4 - core index']
  #allocation1 [shape = 'u32[72,128]{1,0:T(1,128)}', space=vmem, size = 0x9000, scoped, tag = 'internal scratch']
  #allocation2 [shape = 's32[1]{0}', space=sflag, size = 0x4, scoped, tag = 'scoped memory for run.1']
  #allocation3 [shape = 's32[1]{0:T(128)S(6)}', space=smem, size = 0x200, scoped, tag = 'prefetched SMEM operand 0']
  %s0 = inlined_call_operand.<no memory space> [shape: s32[1], index: 0, kind: input, shape index: {}]
  %s1 = inlined_call_operand.vmem [shape: f32[8,256], index: 1, kind: input, shape index: {}]
  %s2 = inlined_call_operand.hbm [shape: bf16[256,256], index: 2, kind: input, shape index: {}]
  %s3 = inlined_call_operand.vmem [shape: f32[8,256], index: 3, kind: output, shape index: {}]
  %s4 = sld [smem:[#allocation0]]
  $region29: #{run.1} parent=0
    _
  %s6 = ssub.s32 1, %s4
  %s7 = scalar_select 0, %s6, %s4
  %8 = sst [smem:[#allocation3]] %s0
  $region1: #{run.1} parent=0
    #allocation4 [shape = 'u8[131072]{0}', space=vmem, size = 0x20000, scoped, tag = 'input window, operand 2, single buffered']
    #allocation5 [shape = 's32[1]{0}', space=sflag, size = 0x4, scoped, tag = 'scoped memory for run.1']
    %9 = vsyncpa [#allocation5], 0
    // Predicated region
    $region2: #{run.1} parent=1 // pred_check
      _
    $region3: #{run.1} parent=1 // pred_check_branch
      %11 = sbr.rel (0) target = $region5
    $region4: #{run.1} parent=1 // pred_region
      _
    $region5: #{run.1} parent=1 // pred_fallthru
      _
    // Predicated region
    $region6: #{run.1} parent=1 // pred_check
      _
    $region7: #{run.1} parent=1 // pred_check_branch
      %13 = sbr.rel (0) target = $region9
    $region8: #{run.1} parent=1 // pred_region
      %15 = vsyncadd [#allocation5], 0
      %s16 = sshll.u32 %s2, 4
      %s17 = int_to_ptr.hbm [resolvable:$true] %s16
      %s18 = sshll.u32 [#allocation4], 4
      %s19 = int_to_ptr.vmem [resolvable:$true] %s18
      %24 = dma.hbm_to_vmem [thread:$0]  %s17, 4096, %s19, [#allocation5], 128, 128, 8
    $region9: #{run.1} parent=1 // pred_fallthru
      _
    // Predicated region
    $region10: #{run.1} parent=1 // pred_check
      _
    $region11: #{run.1} parent=1 // pred_check_branch
      %26 = sbr.rel (0) target = $region13
    $region12: #{run.1} parent=1 // pred_region
      %28 = dma.done [#allocation5], 4096
    $region13: #{run.1} parent=1 // pred_fallthru
      _
    %s29 = sld [smem:[#allocation3]]
    %v30 = vld [vmem:[%s1] sm:$0xff]
    %v31 = vld [vmem:[%s1 + $0x8] sm:$0xff]
    // While loop
    $region14: #{run.1} parent=1 // loop_pre_header
      _
    $region15: #{run.1} parent=1 // loop_header
      %s33 = sphi 0, %s35
      %p34 = scmp.ge.s32.totalorder %s33, %s29
      %v38 = vphi %v30, %v304
      %v39 = vphi %v31, %v305
    $region16: #{run.1} parent=1 // loop_header_branch
      %37 = sbr.rel (%p34) target = $region20
    $region17: #{run.1} parent=1 // loop_body
      %v40 = vpack.c.bf16 %v38, %v38
      %v41 = vpack.c.bf16 %v39, %v39
      %v42 = vld [vmem:[#allocation4] sm:$0xff]
      %v43 = vld [vmem:[#allocation4 + $0x8] sm:$0xff]
      %v44 = vld [vmem:[#allocation4 + $0x10] sm:$0xff]
      %v45 = vld [vmem:[#allocation4 + $0x18] sm:$0xff]
      %v46 = vld [vmem:[#allocation4 + $0x20] sm:$0xff]
      %v47 = vld [vmem:[#allocation4 + $0x28] sm:$0xff]
      %v48 = vld [vmem:[#allocation4 + $0x30] sm:$0xff]
      %v49 = vld [vmem:[#allocation4 + $0x38] sm:$0xff]
      %v50 = vld [vmem:[#allocation4 + $0x40] sm:$0xff]
      %v51 = vld [vmem:[#allocation4 + $0x48] sm:$0xff]
      %v52 = vld [vmem:[#allocation4 + $0x50] sm:$0xff]
      %v53 = vld [vmem:[#allocation4 + $0x58] sm:$0xff]
      %v54 = vld [vmem:[#allocation4 + $0x60] sm:$0xff]
      %v55 = vld [vmem:[#allocation4 + $0x68] sm:$0xff]
      %v56 = vld [vmem:[#allocation4 + $0x70] sm:$0xff]
      %v57 = vld [vmem:[#allocation4 + $0x78] sm:$0xff]
      %v58 = vld [vmem:[#allocation4 + $0x80] sm:$0xff]
      %v59 = vld [vmem:[#allocation4 + $0x88] sm:$0xff]
      %v60 = vld [vmem:[#allocation4 + $0x90] sm:$0xff]
      %v61 = vld [vmem:[#allocation4 + $0x98] sm:$0xff]
      %v62 = vld [vmem:[#allocation4 + $0xa0] sm:$0xff]
      %v63 = vld [vmem:[#allocation4 + $0xa8] sm:$0xff]
      %v64 = vld [vmem:[#allocation4 + $0xb0] sm:$0xff]
      %v65 = vld [vmem:[#allocation4 + $0xb8] sm:$0xff]
      %v66 = vld [vmem:[#allocation4 + $0xc0] sm:$0xff]
      %v67 = vld [vmem:[#allocation4 + $0xc8] sm:$0xff]
      %v68 = vld [vmem:[#allocation4 + $0xd0] sm:$0xff]
      %v69 = vld [vmem:[#allocation4 + $0xd8] sm:$0xff]
      %v70 = vld [vmem:[#allocation4 + $0xe0] sm:$0xff]
      %v71 = vld [vmem:[#allocation4 + $0xe8] sm:$0xff]
      %v72 = vld [vmem:[#allocation4 + $0xf0] sm:$0xff]
      %v73 = vld [vmem:[#allocation4 + $0xf8] sm:$0xff]
      %v106 = vunpack.c.l.b16 %v42
      %v107 = vunpack.c.h.b16 %v42
      %v108 = vunpack.c.l.b16 %v43
      %v109 = vunpack.c.h.b16 %v43
      %v110 = vunpack.c.l.b16 %v44
      %v111 = vunpack.c.h.b16 %v44
      %v112 = vunpack.c.l.b16 %v45
      %v113 = vunpack.c.h.b16 %v45
      %v114 = vunpack.c.l.b16 %v46
      %v115 = vunpack.c.h.b16 %v46
      %v116 = vunpack.c.l.b16 %v47
      %v117 = vunpack.c.h.b16 %v47
      %v118 = vunpack.c.l.b16 %v48
      %v119 = vunpack.c.h.b16 %v48
      %v120 = vunpack.c.l.b16 %v49
      %v121 = vunpack.c.h.b16 %v49
      %v122 = vunpack.c.l.b16 %v50
      %v123 = vunpack.c.h.b16 %v50
      %v124 = vunpack.c.l.b16 %v51
      %v125 = vunpack.c.h.b16 %v51
      %v126 = vunpack.c.l.b16 %v52
      %v127 = vunpack.c.h.b16 %v52
      %v128 = vunpack.c.l.b16 %v53
      %v129 = vunpack.c.h.b16 %v53
      %v130 = vunpack.c.l.b16 %v54
      %v131 = vunpack.c.h.b16 %v54
      %v132 = vunpack.c.l.b16 %v55
      %v133 = vunpack.c.h.b16 %v55
      %v134 = vunpack.c.l.b16 %v56
      %v135 = vunpack.c.h.b16 %v56
      %v136 = vunpack.c.l.b16 %v57
      %v137 = vunpack.c.h.b16 %v57
      %v138 = vunpack.c.l.b16 %v58
      %v139 = vunpack.c.h.b16 %v58
      %v140 = vunpack.c.l.b16 %v59
      %v141 = vunpack.c.h.b16 %v59
      %v142 = vunpack.c.l.b16 %v60
      %v143 = vunpack.c.h.b16 %v60
      %v144 = vunpack.c.l.b16 %v61
      %v145 = vunpack.c.h.b16 %v61
      %v146 = vunpack.c.l.b16 %v62
      %v147 = vunpack.c.h.b16 %v62
      %v148 = vunpack.c.l.b16 %v63
      %v149 = vunpack.c.h.b16 %v63
      %v150 = vunpack.c.l.b16 %v64
      %v151 = vunpack.c.h.b16 %v64
      %v152 = vunpack.c.l.b16 %v65
      %v153 = vunpack.c.h.b16 %v65
      %v154 = vunpack.c.l.b16 %v66
      %v155 = vunpack.c.h.b16 %v66
      %v156 = vunpack.c.l.b16 %v67
      %v157 = vunpack.c.h.b16 %v67
      %v158 = vunpack.c.l.b16 %v68
      %v159 = vunpack.c.h.b16 %v68
      %v160 = vunpack.c.l.b16 %v69
      %v161 = vunpack.c.h.b16 %v69
      %v162 = vunpack.c.l.b16 %v70
      %v163 = vunpack.c.h.b16 %v70
      %v164 = vunpack.c.l.b16 %v71
      %v165 = vunpack.c.h.b16 %v71
      %v166 = vunpack.c.l.b16 %v72
      %v167 = vunpack.c.h.b16 %v72
      %v168 = vunpack.c.l.b16 %v73
      %v169 = vunpack.c.h.b16 %v73
      %v170 = vpack.c.b16 %v108, %v106
      %v171 = vpack.c.b16 %v109, %v107
      %v172 = vpack.c.b16 %v112, %v110
      %v173 = vpack.c.b16 %v113, %v111
      %v174 = vpack.c.b16 %v116, %v114
      %v175 = vpack.c.b16 %v117, %v115
      %v176 = vpack.c.b16 %v120, %v118
      %v177 = vpack.c.b16 %v121, %v119
      %v178 = vpack.c.b16 %v124, %v122
      %v179 = vpack.c.b16 %v125, %v123
      %v180 = vpack.c.b16 %v128, %v126
      %v181 = vpack.c.b16 %v129, %v127
      %v182 = vpack.c.b16 %v132, %v130
      %v183 = vpack.c.b16 %v133, %v131
      %v184 = vpack.c.b16 %v136, %v134
      %v185 = vpack.c.b16 %v137, %v135
      %v186 = vpack.c.b16 %v140, %v138
      %v187 = vpack.c.b16 %v141, %v139
      %v188 = vpack.c.b16 %v144, %v142
      %v189 = vpack.c.b16 %v145, %v143
      %v190 = vpack.c.b16 %v148, %v146
      %v191 = vpack.c.b16 %v149, %v147
      %v192 = vpack.c.b16 %v152, %v150
      %v193 = vpack.c.b16 %v153, %v151
      %v194 = vpack.c.b16 %v156, %v154
      %v195 = vpack.c.b16 %v157, %v155
      %v196 = vpack.c.b16 %v160, %v158
      %v197 = vpack.c.b16 %v161, %v159
      %v198 = vpack.c.b16 %v164, %v162
      %v199 = vpack.c.b16 %v165, %v163
      %v200 = vpack.c.b16 %v168, %v166
      %v201 = vpack.c.b16 %v169, %v167
      %234 = vmatpush.bf16.msra.mxu0 %v184
      %235 = vmatpush.bf16.msra.mxu0 %v182
      %236 = vmatpush.bf16.msra.mxu0 %v180
      %237 = vmatpush.bf16.msra.mxu0 %v178
      %238 = vmatpush.bf16.msra.mxu0 %v176
      %239 = vmatpush.bf16.msra.mxu0 %v174
      %240 = vmatpush.bf16.msra.mxu0 %v172
      %241 = vmatpush.bf16.msra.mxu0 %v170
      %242 = vmatmul.bf16.gmra.mxu0 %v40
      %v243 = vpop.f32.mrf.mxu0
      %v244 = vadd.f32 0.0, %v243
      %v245 = vpop.f32.mrf.mxu0
      %246 = vdwg.mxu0
      %247 = vmatpush.bf16.msra.mxu0 %v200
      %248 = vmatpush.bf16.msra.mxu0 %v198
      %249 = vmatpush.bf16.msra.mxu0 %v196
      %250 = vmatpush.bf16.msra.mxu0 %v194
      %251 = vmatpush.bf16.msra.mxu0 %v192
      %252 = vmatpush.bf16.msra.mxu0 %v190
      %253 = vmatpush.bf16.msra.mxu0 %v188
      %254 = vmatpush.bf16.msra.mxu0 %v186
      %255 = vmatmul.bf16.gmra.mxu0 %v41
      %v256 = vpop.f32.mrf.mxu0
      %v257 = vadd.f32 %v244, %v256
      %v258 = vpop.f32.mrf.mxu0
      %259 = vdwg.mxu0
      %260 = vmatpush.bf16.msra.mxu0 %v185
      %261 = vmatpush.bf16.msra.mxu0 %v183
      %262 = vmatpush.bf16.msra.mxu0 %v181
      %263 = vmatpush.bf16.msra.mxu0 %v179
      %264 = vmatpush.bf16.msra.mxu0 %v177
      %265 = vmatpush.bf16.msra.mxu0 %v175
      %266 = vmatpush.bf16.msra.mxu0 %v173
      %267 = vmatpush.bf16.msra.mxu0 %v171
      %268 = vmatmul.bf16.gmra.mxu0 %v40
      %v269 = vpop.f32.mrf.mxu0
      %v270 = vadd.f32 0.0, %v269
      %v271 = vpop.f32.mrf.mxu0
      %272 = vdwg.mxu0
      %273 = vmatpush.bf16.msra.mxu0 %v201
      %274 = vmatpush.bf16.msra.mxu0 %v199
      %275 = vmatpush.bf16.msra.mxu0 %v197
      %276 = vmatpush.bf16.msra.mxu0 %v195
      %277 = vmatpush.bf16.msra.mxu0 %v193
      %278 = vmatpush.bf16.msra.mxu0 %v191
      %279 = vmatpush.bf16.msra.mxu0 %v189
      %280 = vmatpush.bf16.msra.mxu0 %v187
      %281 = vmatmul.bf16.gmra.mxu0 %v41
      %v282 = vpop.f32.mrf.mxu0
      %v283 = vadd.f32 %v270, %v282
      %v284 = vpop.f32.mrf.mxu0
      %285 = vdwg.mxu0
      %v286 = vsub.f32 %v257, 0.3
      %v287 = vsub.f32 %v283, 0.3
      %v288 = vmul.f32 %v286, %v286
      %v289 = vmul.f32 %v287, %v287
      %v290 = vmul.f32 %v288, -50.0
      %v291 = vmul.f32 %v289, -50.0
      %v292 = vadd.f32 %v290, -1.609438
      %v293 = vadd.f32 %v291, -1.609438
      %v294 = vmul.f32 %v292, 1.442695
      %v295 = vpow.pop %v294
      %v296 = vmul.f32 %v293, 1.442695
      %v297 = vpow.pop %v296
      %v298 = vadd.f32 %v38, %v295
      %v299 = vadd.f32 %v39, %v297
      %v300 = vadd.f32 %v298, -0.1
      %v301 = vadd.f32 %v299, -0.1
      %v302 = vmax.f32 %v300, 0.0
      %v303 = vmax.f32 %v301, 0.0
      %v304 = vmin.f32 %v302, 1.0
      %v305 = vmin.f32 %v303, 1.0
    $region18: #{run.1} parent=1 // loop_footer
      %s35 = sadd.s32 %s33, 1
    $region19: #{run.1} parent=1 // loop_footer_branch
      %32 = sbr.rel target = $region15
    $region20: #{run.1} parent=1 // loop_exit
      _
    %306 = vst [vmem:[%s3] sm:$0xff] %v38
    %307 = vst [vmem:[%s3 + $0x8] sm:$0xff] %v39
    // Predicated region
    $region21: #{run.1} parent=1 // pred_check
      _
    $region22: #{run.1} parent=1 // pred_check_branch
      %309 = sbr.rel (0) target = $region24
    $region23: #{run.1} parent=1 // pred_region
      _
    $region24: #{run.1} parent=1 // pred_fallthru
      _
    // Predicated region
    $region25: #{run.1} parent=1 // pred_check
      _
    $region26: #{run.1} parent=1 // pred_check_branch
      %311 = sbr.rel (0) target = $region28
    $region27: #{run.1} parent=1 // pred_region
      _
    $region28: #{run.1} parent=1 // pred_fallthru
      _
    %312 = vsyncpa [#allocation5], 1

</llo_original>
